<compile_context>
chip_gen: v6e
topology: v6e:2x2x1
jax: 0.10.0
libtpu: 0.0.40
codegen_flags: <defaults>
</compile_context>

<pallas_src>
import math

import jax
import jax.numpy as jnp
from jax.experimental import pallas as pl
from jax.experimental.pallas import tpu as pltpu


def _add_pe_kernel(x_ref, pe_ref, o_ref):
    # x_ref / o_ref: (Bt, St, D); pe_ref: (1, St, D), broadcast over batch.
    o_ref[...] = x_ref[...] + pe_ref[...]


def _tpu_budget():
    """Generation-aware (vmem_limit_bytes, target_block_bytes).

    v7x (64 MiB VMEM/TC)   -> 32 MiB scoped limit, ~4 MiB blocks
    v5e/v6e (128 MiB VMEM) -> 64 MiB scoped limit, ~8 MiB blocks
    """
    try:
        cap = pltpu.get_tpu_info().vmem_capacity_bytes
    except Exception:  # info unavailable at trace time: assume the tightest (v7x)
        cap = 64 << 20
    vmem_limit = min(cap // 2, 64 << 20)
    return vmem_limit, vmem_limit // 8


def _choose_block(B, S, D, itemsize, target_bytes):
    """Pick a (Bt, St) block; the lane axis always carries the full D.

    St is kept a multiple of the dtype sublane tile (8 f32 / 16 bf16 /
    32 int8) or equal to S; Bt has no layout constraint.
    """
    sub = max(8, 32 // itemsize)
    row_bytes = max(1, D * itemsize)
    if B * S * row_bytes <= target_bytes:
        return B, S                                   # whole problem, one block
    if S <= sub:
        # Sequence axis cannot be sub-tiled; tile the batch axis only.
        bt = max(1, target_bytes // (S * row_bytes))
        return min(bt, B), S
    if B * sub * row_bytes <= target_bytes:
        # Keep the full batch per block; tile the sequence axis.
        st = (target_bytes // (B * row_bytes)) // sub * sub
        return B, min(S, max(sub, st))
    # Very large batch: tile batch, keep St at the dtype sublane tile.
    # TODO(synk): if D itself were enormous (>~1 MiB per row) the lane axis
    # would also need tiling; embedding dims never get there in practice.
    bt = max(1, target_bytes // (sub * row_bytes))
    return min(bt, B), sub


def make_pe(max_size, embedding_dim, dtype=jnp.float32):
    """Build the positional-encoding buffer exactly as the module __init__ does."""
    position = jnp.arange(0, max_size, dtype=jnp.float32)[:, None]          # (S, 1)
    div_freq = jnp.exp(
        jnp.arange(0, embedding_dim, 2, dtype=jnp.float32)
        * -(math.log(10000.0) / embedding_dim)
    )                                                                        # (D//2,)
    ang = position * div_freq                                                # (S, D//2)
    pe = jnp.zeros((max_size, embedding_dim), jnp.float32)
    pe = pe.at[:, 0::2].set(jnp.sin(ang))
    # TODO(synk): the original torch line `pe[0, 1::2] = cos(position * div_freq)`
    # is shape-invalid for max_size > 1 (the module cannot be constructed as
    # written); we implement the standard interpretation `pe[:, 1::2] = cos(...)`.
    pe = pe.at[:, 1::2].set(jnp.cos(ang))
    return pe[None].astype(dtype)                                            # (1, S, D)


def bb_positional_encoding(x, pe):
    """x: (B, S, D), pe: (1, S, D) -> x + pe (pe broadcast over batch)."""
    B, S, D = x.shape
    assert pe.shape == (1, S, D)
    if pe.dtype != x.dtype:
        # TODO(synk): torch promotes x + float32-pe to float32 for half inputs;
        # here the add runs in x.dtype. Pre-build pe in x.dtype to avoid a
        # per-call cast pass over HBM.
        pe = pe.astype(x.dtype)

    itemsize = jnp.dtype(x.dtype).itemsize
    vmem_limit, target_bytes = _tpu_budget()
    Bt, St = _choose_block(B, S, D, itemsize, target_bytes)

    # Seq tiles on the OUTER grid axis, batch tiles inner: pe's block index
    # only changes on the outer axis, so its tile stays VMEM-resident across
    # the whole inner batch loop.  (pipeline_mode=pl.Buffered(1) on pe would
    # reclaim its second buffer, but the 6-block budget above already leaves
    # 25% headroom, so we keep the portable default depth.)
    grid = (pl.cdiv(S, St), pl.cdiv(B, Bt))

    out = pl.pallas_call(
        _add_pe_kernel,
        out_shape=jax.ShapeDtypeStruct((B, S, D), x.dtype),
        grid_spec=pl.GridSpec(
            grid=grid,
            in_specs=[
                pl.BlockSpec((Bt, St, D), lambda s, b: (b, s, 0)),   # x tile
                pl.BlockSpec((1, St, D), lambda s, b: (0, s, 0)),    # pe tile
            ],
            out_specs=pl.BlockSpec((Bt, St, D), lambda s, b: (b, s, 0)),
        ),
        compiler_params=pltpu.CompilerParams(
            # Megacore sharding forced onto the outer seq axis: each core
            # streams only its half of pe; inner batch axis is a plain loop.
            dimension_semantics=("parallel", "arbitrary"),
            vmem_limit_bytes=vmem_limit,
        ),
        cost_estimate=pl.CostEstimate(
            flops=B * S * D,
            transcendentals=0,
            bytes_accessed=(2 * B * S + S) * D * itemsize,
        ),
    )(x, pe)

    return out


if __name__ == "__main__":
    max_size = 8          # seq length S
    embedding_dim = 32    # hidden D
    batch = 2

    key = jax.random.PRNGKey(0)
    x = jax.random.normal(key, (batch, max_size, embedding_dim), dtype=jnp.float32)

    pe = make_pe(max_size, embedding_dim, dtype=x.dtype)

    out = bb_positional_encoding(x, pe)
    out = jax.block_until_ready(out)

    ref = x + pe  # pure-JAX reference of the forward pass
    assert out.shape == x.shape
    assert jnp.allclose(out, ref, atol=1e-6, rtol=1e-6)

    print("KERNEL_OK")
</pallas_src>

<mosaic_0001>
module attributes {stable_mosaic.version = 11 : i64} {
  func.func @_add_pe_kernel(%arg0: i32, %arg1: i32, %arg2: memref<2x8x32xf32, #tpu.memory_space<vmem>>, %arg3: memref<1x8x32xf32, #tpu.memory_space<vmem>>, %arg4: memref<2x8x32xf32, #tpu.memory_space<vmem>>) attributes {dimension_semantics = [#tpu.dimension_semantics<parallel>, #tpu.dimension_semantics<arbitrary>], iteration_bounds = array<i64: 1, 1>, scalar_prefetch = 0 : i64, scratch_operands = 0 : i64, tpu.core_type = #tpu.core_type<tc>, window_params = [{transform_indices = @transform_0, window_bounds = array<i64: 2, 8, 32>}, {transform_indices = @transform_1, window_bounds = array<i64: 1, 8, 32>}, {transform_indices = @transform_2, window_bounds = array<i64: 2, 8, 32>}]} {
    %c0 = arith.constant 0 : index
    %c0_0 = arith.constant 0 : index
    %c0_1 = arith.constant 0 : index
    %0 = vector.load %arg2[%c0, %c0_0, %c0_1] : memref<2x8x32xf32, #tpu.memory_space<vmem>>, vector<2x8x32xf32>
    %c0_2 = arith.constant 0 : index
    %c0_3 = arith.constant 0 : index
    %c0_4 = arith.constant 0 : index
    %1 = vector.load %arg3[%c0_2, %c0_3, %c0_4] : memref<1x8x32xf32, #tpu.memory_space<vmem>>, vector<1x8x32xf32>
    %2 = vector.broadcast %1 : vector<1x8x32xf32> to vector<2x8x32xf32>
    %3 = arith.addf %0, %2 : vector<2x8x32xf32>
    %c0_5 = arith.constant 0 : index
    %c0_6 = arith.constant 0 : index
    %c0_7 = arith.constant 0 : index
    %4 = vector.load %arg4[%c0_5, %c0_6, %c0_7] : memref<2x8x32xf32, #tpu.memory_space<vmem>>, vector<2x8x32xf32>
    tpu.vector_store %arg4[%c0_5, %c0_6, %c0_7], %3 {strides = array<i32>} : memref<2x8x32xf32, #tpu.memory_space<vmem>>, vector<2x8x32xf32>,
    return
  }
  func.func @transform_0(%arg0: i32, %arg1: i32) -> (i32, i32, i32) {
    %c0_i32 = arith.constant 0 : i32
    %c0_i32_0 = arith.constant 0 : i32
    return %arg1, %arg0, %c0_i32 : i32, i32, i32
  }
  func.func @transform_1(%arg0: i32, %arg1: i32) -> (i32, i32, i32) {
    %c0_i32 = arith.constant 0 : i32
    %c0_i32_0 = arith.constant 0 : i32
    %c0_i32_1 = arith.constant 0 : i32
    return %c0_i32, %arg0, %c0_i32_0 : i32, i32, i32
  }
  func.func @transform_2(%arg0: i32, %arg1: i32) -> (i32, i32, i32) {
    %c0_i32 = arith.constant 0 : i32
    %c0_i32_0 = arith.constant 0 : i32
    return %arg1, %arg0, %c0_i32 : i32, i32, i32
  }
}

</mosaic_0001>

<llo_original>
// kernel: tpu_custom_call.1
$region0: #{tpu_custom_call.1}
  #allocation0 [shape = 'u32[]', space=smem, size = 0x4, offset = 0x4, fixed_abs, tag = 'smem constant byte address 0x4 - core index']
  #allocation1 [shape = 'u32[144,128]{1,0:T(1,128)}', space=vmem, size = 0x12000, scoped, tag = 'internal scratch']
  %s0 = inlined_call_operand.hbm [shape: f32[2,8,32], index: 0, kind: input, shape index: {}]
  %s1 = inlined_call_operand.hbm [shape: f32[1,8,32], index: 1, kind: input, shape index: {}]
  %s2 = inlined_call_operand.hbm [shape: f32[2,8,32], index: 2, kind: output, shape index: {}]
  %s3 = sld [smem:[#allocation0]]
  $region26: #{tpu_custom_call.1} parent=0
    _
  %s5 = ssub.s32 1, %s3
  %s6 = scalar_select 0, %s5, %s3
  $region1: #{tpu_custom_call.1} parent=0
    #allocation2 [shape = 'u8[8192]{0}', space=vmem, size = 0x2000, scoped, tag = 'input window, operand 0, single buffered']
    #allocation3 [shape = 's32[1]{0}', space=sflag, size = 0x4, scoped, tag = 'scoped memory for tpu_custom_call.1']
    #allocation4 [shape = 's32[1]{0}', space=sflag, size = 0x4, scoped, tag = 'scoped memory for tpu_custom_call.1']
    #allocation5 [shape = 'u8[4096]{0}', space=vmem, size = 0x1000, scoped, tag = 'input window, operand 1, single buffered']
    #allocation6 [shape = 's32[1]{0}', space=sflag, size = 0x4, scoped, tag = 'scoped memory for tpu_custom_call.1']
    #allocation7 [shape = 'u8[8192]{0}', space=vmem, size = 0x2000, scoped, tag = 'output window, operand 0, single buffered']
    %7 = vsyncpa [#allocation3], 0
    %8 = vsyncpa [#allocation6], 0
    %9 = vsyncpa [#allocation4], 0
    // Predicated region
    $region2: #{tpu_custom_call.1} parent=1 // pred_check
      _
    $region3: #{tpu_custom_call.1} parent=1 // pred_check_branch
      %11 = sbr.rel (0) target = $region5
    $region4: #{tpu_custom_call.1} parent=1 // pred_region
      %s13 = ssub.s32 256, 256
      %14 = vsyncadd [#allocation3], %s13
      %s15 = sshll.u32 [#allocation2], 4
      %s16 = int_to_ptr.vmem [resolvable:$true] %s15
      %21 = dma.hbm_to_vmem [thread:$0]  %s0, 256, %s16, [#allocation3], 128, 128, 8
    $region5: #{tpu_custom_call.1} parent=1 // pred_fallthru
      _
    // Predicated region
    $region6: #{tpu_custom_call.1} parent=1 // pred_check
      _
    $region7: #{tpu_custom_call.1} parent=1 // pred_check_branch
      %23 = sbr.rel (0) target = $region9
    $region8: #{tpu_custom_call.1} parent=1 // pred_region
      %s25 = ssub.s32 128, 128
      %26 = vsyncadd [#allocation6], %s25
      %s28 = sshll.u32 [#allocation5], 4
      %s29 = int_to_ptr.vmem [resolvable:$true] %s28
      %31 = dma.hbm_to_vmem [thread:$0]  %s1, 128, %s29, [#allocation6]
    $region9: #{tpu_custom_call.1} parent=1 // pred_fallthru
      _
    // Predicated region
    $region10: #{tpu_custom_call.1} parent=1 // pred_check
      _
    $region11: #{tpu_custom_call.1} parent=1 // pred_check_branch
      %33 = sbr.rel (0) target = $region13
    $region12: #{tpu_custom_call.1} parent=1 // pred_region
      %34 = dma.done [#allocation3], 256
    $region13: #{tpu_custom_call.1} parent=1 // pred_fallthru
      _
    // Predicated region
    $region14: #{tpu_custom_call.1} parent=1 // pred_check
      _
    $region15: #{tpu_custom_call.1} parent=1 // pred_check_branch
      %36 = sbr.rel (0) target = $region17
    $region16: #{tpu_custom_call.1} parent=1 // pred_region
      %37 = dma.done [#allocation6], 128
    $region17: #{tpu_custom_call.1} parent=1 // pred_fallthru
      _
    %v38 = vld [vmem:[#allocation2] sm:$0xff]
    %v39 = vld [vmem:[#allocation2 + $0x8] sm:$0xff]
    %v40 = vld [vmem:[#allocation5] sm:$0xff]
    %v41 = vadd.f32 %v38, %v40
    %v42 = vadd.f32 %v39, %v40
    %vm43 = vcmask 261120
    %44 = vst.msk [vmem:[#allocation7] sm:$0xff] %vm43, %v41
    %45 = vst.msk [vmem:[#allocation7 + $0x8] sm:$0xff] %vm43, %v42
    // Predicated region
    $region18: #{tpu_custom_call.1} parent=1 // pred_check
      _
    $region19: #{tpu_custom_call.1} parent=1 // pred_check_branch
      %47 = sbr.rel (0) target = $region21
    $region20: #{tpu_custom_call.1} parent=1 // pred_region
      %s49 = ssub.s32 256, 256
      %50 = vsyncadd [#allocation4], %s49
      %s51 = sshll.u32 [#allocation7], 4
      %s52 = int_to_ptr.vmem [resolvable:$true] %s51
      %57 = dma.vmem_to_hbm [thread:$0]  %s52, 256, %s2, [#allocation4], 128, 128, 8
    $region21: #{tpu_custom_call.1} parent=1 // pred_fallthru
      _
    // Predicated region
    $region22: #{tpu_custom_call.1} parent=1 // pred_check
      _
    $region23: #{tpu_custom_call.1} parent=1 // pred_check_branch
      %59 = sbr.rel (0) target = $region25
    $region24: #{tpu_custom_call.1} parent=1 // pred_region
      %60 = dma.done [#allocation4], 256
    $region25: #{tpu_custom_call.1} parent=1 // pred_fallthru
      _
    %61 = vsyncpa [#allocation3], 1
    %62 = vsyncpa [#allocation6], 1
    %63 = vsyncpa [#allocation4], 1

</llo_original>
